<compile_context>
chip_gen: v6e
topology: v6e:2x2x1
jax: 0.10.0
libtpu: 0.0.40
codegen_flags: <defaults>
</compile_context>

<pallas_src>
import jax
import jax.numpy as jnp
from jax import lax
from jax.experimental import pallas as pl
from jax.experimental.pallas import tpu as pltpu


def _round_up(x, m):
    return (x + m - 1) // m * m


def _make_kernel(tile_m, k_pad, rows):
    def kernel(xb_ref, eb_ref, ef_ref, e2_ref, q_ref, idx_ref, cnt_ref):
        # xb_ref:  (TM, C)   bf16 input rows (distance-matmul operand)
        # eb_ref:  (Kp, C)   bf16 codebook  (distance-matmul operand)
        # ef_ref:  (Kp, C)   f32  codebook  (exact one-hot gather)
        # e2_ref:  (1,  Kp)  f32  0.5*||e||^2 (padded codes = +huge)
        # q_ref:   (TM, C)   f32  quantized rows
        # idx_ref: (1,1,TM)  i32  nearest-code index (lane-dense)
        # cnt_ref: (1,1,Kp)  i32  per-tile partial bincount
        i = pl.program_id(0)

        xb = xb_ref[...]
        eb = eb_ref[...]

        # x . e^T on the MXU, contracting the last dim of both operands
        # directly (no transposed codebook copy), bf16 in / f32 accumulate.
        xe = lax.dot_general(xb, eb, (((1,), (1,)), ((), ())),
                             preferred_element_type=jnp.float32)     # (TM, Kp)

        # argmin_k ||x - e_k||^2  ==  argmin_k (0.5*||e_k||^2 - x.e_k)
        # (||x||^2 is constant per row, so it is dropped.)
        d = e2_ref[...] - xe                                          # (TM, Kp)

        dmin = jnp.min(d, axis=-1, keepdims=True)                     # (TM, 1)
        col = lax.broadcasted_iota(jnp.int32, d.shape, 1)             # (TM, Kp)
        # first-match tie-breaking (matches torch.argmin on exact ties)
        idx = jnp.min(jnp.where(d <= dmin, col, k_pad),
                      axis=-1, keepdims=True)                         # (TM, 1)

        # one-hot gather of exact f32 codebook rows (same as one_hot @ weight)
        onehot = (col == idx).astype(jnp.float32)                     # (TM, Kp)
        q_ref[...] = jnp.dot(onehot, ef_ref[...],
                             preferred_element_type=jnp.float32)

        # lane-dense index store: (TM,1) -> (1,TM) -> (1,1,TM)
        idx_ref[...] = jnp.transpose(idx).astype(jnp.int32)[None]

        # partial bincount for this row tile, masking padded rows
        row = i * tile_m + lax.broadcasted_iota(jnp.int32, (tile_m, 1), 0)
        valid = (row < rows).astype(jnp.float32)                      # (TM, 1)
        cnt = jnp.sum(onehot * valid, axis=0, keepdims=True)          # (1, Kp)
        cnt_ref[...] = cnt.astype(jnp.int32)[None]

    return kernel


def euclidean_codebook_forward(x, embedding, *, tile_m=256,
                               distance_dtype=jnp.bfloat16):
    """x: (B, N, C) float; embedding: (K, C) float.

    Returns (quantized (B,N,C) f32, embed_idx (B,N) i32, code_usage () f32),
    matching EuclideanCodebook.forward (eval / kmeans_init=False path).
    """
    B, N, C = x.shape
    K = embedding.shape[0]

    x_f32 = x.astype(jnp.float32)
    emb_f32 = embedding.astype(jnp.float32)

    rows = B * N
    # Row tile: big (MXU-filling) by default, shrunk for small inputs and kept
    # a multiple of 8 sublanes. Rows are padded up to a whole number of tiles.
    tm = max(8, min(_round_up(tile_m, 8), _round_up(rows, 8)))
    rows_pad = _round_up(rows, tm)
    num_tiles = rows_pad // tm

    # Pad codes to a lane-dense multiple of 128; padded codes get a huge
    # half-norm so they can never win the argmin.
    k_pad = _round_up(K, 128)

    flat = x_f32.reshape(rows, C)
    x_d = jnp.zeros((rows_pad, C), distance_dtype).at[:rows].set(
        flat.astype(distance_dtype))

    ef = jnp.zeros((k_pad, C), jnp.float32).at[:K].set(emb_f32)       # f32 gather
    eb = ef.astype(distance_dtype)                                     # matmul copy
    e2_half = jnp.full((1, k_pad), 1e30, jnp.float32).at[0, :K].set(
        0.5 * jnp.sum(emb_f32 * emb_f32, axis=-1))                     # hoisted

    kernel = _make_kernel(tm, k_pad, rows)

    quant, idx, cnt = pl.pallas_call(
        kernel,
        out_shape=(
            jax.ShapeDtypeStruct((rows_pad, C), jnp.float32),
            jax.ShapeDtypeStruct((num_tiles, 1, tm), jnp.int32),
            jax.ShapeDtypeStruct((num_tiles, 1, k_pad), jnp.int32),
        ),
        grid_spec=pltpu.PrefetchScalarGridSpec(
            num_scalar_prefetch=0,
            grid=(num_tiles,),
            in_specs=[
                pl.BlockSpec((tm, C), lambda i: (i, 0)),        # x row tile (bf16)
                pl.BlockSpec((k_pad, C), lambda i: (0, 0)),     # codebook (bf16)
                pl.BlockSpec((k_pad, C), lambda i: (0, 0)),     # codebook (f32)
                pl.BlockSpec((1, k_pad), lambda i: (0, 0)),     # 0.5*||e||^2
            ],
            out_specs=[
                pl.BlockSpec((tm, C), lambda i: (i, 0)),        # quantized
                pl.BlockSpec((1, 1, tm), lambda i: (i, 0, 0)),  # indices
                pl.BlockSpec((1, 1, k_pad), lambda i: (i, 0, 0)),  # partial counts
            ],
        ),
        compiler_params=pltpu.CompilerParams(
            dimension_semantics=("parallel",)),                  # no cross-step state
    )(x_d, eb, ef, e2_half)

    quantized = quant[:rows].reshape(B, N, C)
    embed_idx = idx.reshape(rows_pad)[:rows].reshape(B, N)
    codebook_cnt = jnp.sum(cnt, axis=(0, 1))[:K]                 # (K,) i32
    zero_cnt = jnp.sum(codebook_cnt == 0)
    code_usage = 100.0 * zero_cnt.astype(jnp.float32) / K
    return quantized, embed_idx, code_usage


if __name__ == "__main__":
    # Small shapes consistent with the module: B=2, H=W=8 -> N=64, C=32, K=64.
    key = jax.random.PRNGKey(0)
    kx, ke = jax.random.split(key)

    B, H, W = 2, 8, 8
    embedding_dim = 32
    num_embeddings = 64

    x = jax.random.normal(kx, (B, H * W, embedding_dim), dtype=jnp.float32)
    # Deterministic init matching nn.Embedding.weight.uniform_(-1/K, 1/K)
    embedding = jax.random.uniform(
        ke, (num_embeddings, embedding_dim),
        minval=-1.0 / num_embeddings, maxval=1.0 / num_embeddings,
        dtype=jnp.float32)

    quantized, embed_idx, code_usage = euclidean_codebook_forward(x, embedding)
    jax.block_until_ready((quantized, embed_idx, code_usage))

    assert quantized.shape == (B, H * W, embedding_dim)
    assert embed_idx.shape == (B, H * W)
    assert code_usage.shape == ()
    print("KERNEL_OK")
</pallas_src>

<mosaic_0001>
module attributes {stable_mosaic.version = 11 : i64} {
  func.func @kernel(%arg0: i32, %arg1: memref<128x32xbf16, #tpu.memory_space<vmem>>, %arg2: memref<128x32xbf16, #tpu.memory_space<vmem>>, %arg3: memref<128x32xf32, #tpu.memory_space<vmem>>, %arg4: memref<1x128xf32, #tpu.memory_space<vmem>>, %arg5: memref<128x32xf32, #tpu.memory_space<vmem>>, %arg6: memref<1x1x128xi32, #tpu.memory_space<vmem>>, %arg7: memref<1x1x128xi32, #tpu.memory_space<vmem>>) attributes {dimension_semantics = [#tpu.dimension_semantics<parallel>], iteration_bounds = array<i64: 1>, scalar_prefetch = 0 : i64, scratch_operands = 0 : i64, tpu.core_type = #tpu.core_type<tc>, window_params = [{transform_indices = @transform_0, window_bounds = array<i64: 128, 32>}, {pipeline_mode = #tpu.pipeline_mode<synchronous>, transform_indices = @transform_1, window_bounds = array<i64: 128, 32>}, {pipeline_mode = #tpu.pipeline_mode<synchronous>, transform_indices = @transform_2, window_bounds = array<i64: 128, 32>}, {pipeline_mode = #tpu.pipeline_mode<synchronous>, transform_indices = @transform_3, window_bounds = array<i64: 1, 128>}, {transform_indices = @transform_4, window_bounds = array<i64: 128, 32>}, {transform_indices = @transform_5, window_bounds = array<i64: 1, 1, 128>}, {transform_indices = @transform_6, window_bounds = array<i64: 1, 1, 128>}]} {
    %c0 = arith.constant 0 : index
    %c0_0 = arith.constant 0 : index
    %0 = vector.load %arg1[%c0, %c0_0] : memref<128x32xbf16, #tpu.memory_space<vmem>>, vector<128x32xbf16>
    %c0_1 = arith.constant 0 : index
    %c0_2 = arith.constant 0 : index
    %1 = vector.load %arg2[%c0_1, %c0_2] : memref<128x32xbf16, #tpu.memory_space<vmem>>, vector<128x32xbf16>
    %cst = arith.constant dense<0.000000e+00> : vector<128x128xf32>
    %2 = tpu.matmul %0, %1, %cst {dimension_numbers = #tpu.dot_dimension_numbers<[1], [1], [0], [0], [0, 0, 1, 0], [], []>} : vector<128x32xbf16>, vector<128x32xbf16>, vector<128x128xf32> -> vector<128x128xf32>
    %c0_3 = arith.constant 0 : index
    %c0_4 = arith.constant 0 : index
    %3 = vector.load %arg4[%c0_3, %c0_4] : memref<1x128xf32, #tpu.memory_space<vmem>>, vector<1x128xf32>
    %4 = vector.broadcast %3 : vector<1x128xf32> to vector<128x128xf32>
    %5 = arith.subf %4, %2 : vector<128x128xf32>
    %cst_5 = arith.constant dense<0x7F800000> : vector<128xf32>
    %6 = vector.multi_reduction <minimumf>, %5, %cst_5 [1] : vector<128x128xf32> to vector<128xf32>
    %7 = vector.shape_cast %6 : vector<128xf32> to vector<128x1xf32>
    %8 = tpu.iota {dimensions = array<i32: 1>} : vector<128x128xi32>
    %9 = vector.broadcast %7 : vector<128x1xf32> to vector<128x128xf32>
    %10 = arith.cmpf ole, %5, %9 : vector<128x128xf32>
    %c128_i32 = arith.constant 128 : i32
    %11 = vector.broadcast %c128_i32 : i32 to vector<128x128xi32>
    %12 = arith.select %10, %8, %11 : vector<128x128xi1>, vector<128x128xi32>
    %cst_6 = arith.constant dense<2147483647> : vector<128xi32>
    %13 = vector.multi_reduction <minsi>, %12, %cst_6 [1] : vector<128x128xi32> to vector<128xi32>
    %14 = vector.shape_cast %13 : vector<128xi32> to vector<128x1xi32>
    %15 = vector.broadcast %14 : vector<128x1xi32> to vector<128x128xi32>
    %16 = arith.cmpi eq, %8, %15 : vector<128x128xi32>
    %17 = arith.extui %16 : vector<128x128xi1> to vector<128x128xi32>
    %18 = arith.sitofp %17 : vector<128x128xi32> to vector<128x128xf32>
    %c0_7 = arith.constant 0 : index
    %c0_8 = arith.constant 0 : index
    %19 = vector.load %arg3[%c0_7, %c0_8] : memref<128x32xf32, #tpu.memory_space<vmem>>, vector<128x32xf32>
    %cst_9 = arith.constant dense<0.000000e+00> : vector<128x32xf32>
    %20 = tpu.matmul %18, %19, %cst_9 {dimension_numbers = #tpu.dot_dimension_numbers<[1], [0], [0], [1], [0, 0, 1, 1], [], []>} : vector<128x128xf32>, vector<128x32xf32>, vector<128x32xf32> -> vector<128x32xf32>
    %c0_10 = arith.constant 0 : index
    %c0_11 = arith.constant 0 : index
    %21 = vector.load %arg5[%c0_10, %c0_11] : memref<128x32xf32, #tpu.memory_space<vmem>>, vector<128x32xf32>
    tpu.vector_store %arg5[%c0_10, %c0_11], %20 {strides = array<i32>} : memref<128x32xf32, #tpu.memory_space<vmem>>, vector<128x32xf32>,
    %22 = tpu.transpose %14, [1, 0] : vector<128x1xi32> -> vector<1x128xi32>
    %23 = vector.shape_cast %22 : vector<1x128xi32> to vector<1x1x128xi32>
    %c0_12 = arith.constant 0 : index
    %c0_13 = arith.constant 0 : index
    %c0_14 = arith.constant 0 : index
    %24 = vector.load %arg6[%c0_12, %c0_13, %c0_14] : memref<1x1x128xi32, #tpu.memory_space<vmem>>, vector<1x1x128xi32>
    tpu.vector_store %arg6[%c0_12, %c0_13, %c0_14], %23 {strides = array<i32>} : memref<1x1x128xi32, #tpu.memory_space<vmem>>, vector<1x1x128xi32>,
    %c128_i32_15 = arith.constant 128 : i32
    %25 = arith.muli %arg0, %c128_i32_15 : i32
    %26 = tpu.iota {dimensions = array<i32: 0>} : vector<128x1xi32>
    %27 = vector.broadcast %25 : i32 to vector<128x1xi32>
    %28 = arith.addi %27, %26 : vector<128x1xi32>
    %c128_i32_16 = arith.constant 128 : i32
    %29 = vector.broadcast %c128_i32_16 : i32 to vector<128x1xi32>
    %30 = arith.cmpi slt, %28, %29 : vector<128x1xi32>
    %31 = arith.extui %30 : vector<128x1xi1> to vector<128x1xi32>
    %32 = arith.sitofp %31 : vector<128x1xi32> to vector<128x1xf32>
    %33 = vector.broadcast %32 : vector<128x1xf32> to vector<128x128xf32>
    %34 = arith.mulf %18, %33 : vector<128x128xf32>
    %cst_17 = arith.constant dense<0.000000e+00> : vector<128xf32>
    %35 = vector.multi_reduction <add>, %34, %cst_17 [0] : vector<128x128xf32> to vector<128xf32>
    %36 = vector.shape_cast %35 : vector<128xf32> to vector<1x128xf32>
    %37 = arith.fptosi %36 : vector<1x128xf32> to vector<1x128xi32>
    %38 = vector.shape_cast %37 : vector<1x128xi32> to vector<1x1x128xi32>
    %c0_18 = arith.constant 0 : index
    %c0_19 = arith.constant 0 : index
    %c0_20 = arith.constant 0 : index
    %39 = vector.load %arg7[%c0_18, %c0_19, %c0_20] : memref<1x1x128xi32, #tpu.memory_space<vmem>>, vector<1x1x128xi32>
    tpu.vector_store %arg7[%c0_18, %c0_19, %c0_20], %38 {strides = array<i32>} : memref<1x1x128xi32, #tpu.memory_space<vmem>>, vector<1x1x128xi32>,
    return
  }
  func.func @transform_0(%arg0: i32) -> (i32, i32) {
    %c0_i32 = arith.constant 0 : i32
    %c0_i32_0 = arith.constant 0 : i32
    return %arg0, %c0_i32 : i32, i32
  }
  func.func @transform_1(%arg0: i32) -> (i32, i32) {
    %c0_i32 = arith.constant 0 : i32
    %c0_i32_0 = arith.constant 0 : i32
    %c0_i32_1 = arith.constant 0 : i32
    return %c0_i32, %c0_i32_0 : i32, i32
  }
  func.func @transform_2(%arg0: i32) -> (i32, i32) {
    %c0_i32 = arith.constant 0 : i32
    %c0_i32_0 = arith.constant 0 : i32
    %c0_i32_1 = arith.constant 0 : i32
    return %c0_i32, %c0_i32_0 : i32, i32
  }
  func.func @transform_3(%arg0: i32) -> (i32, i32) {
    %c0_i32 = arith.constant 0 : i32
    %c0_i32_0 = arith.constant 0 : i32
    %c0_i32_1 = arith.constant 0 : i32
    return %c0_i32, %c0_i32_0 : i32, i32
  }
  func.func @transform_4(%arg0: i32) -> (i32, i32) {
    %c0_i32 = arith.constant 0 : i32
    %c0_i32_0 = arith.constant 0 : i32
    return %arg0, %c0_i32 : i32, i32
  }
  func.func @transform_5(%arg0: i32) -> (i32, i32, i32) {
    %c0_i32 = arith.constant 0 : i32
    %c0_i32_0 = arith.constant 0 : i32
    %c0_i32_1 = arith.constant 0 : i32
    return %arg0, %c0_i32, %c0_i32_0 : i32, i32, i32
  }
  func.func @transform_6(%arg0: i32) -> (i32, i32, i32) {
    %c0_i32 = arith.constant 0 : i32
    %c0_i32_0 = arith.constant 0 : i32
    %c0_i32_1 = arith.constant 0 : i32
    return %arg0, %c0_i32, %c0_i32_0 : i32, i32, i32
  }
}

</mosaic_0001>

<llo_original>
// kernel: tpu_custom_call.1
$region0: #{tpu_custom_call.1}
  #allocation0 [shape = 'u32[]', space=smem, size = 0x4, offset = 0x4, fixed_abs, tag = 'smem constant byte address 0x4 - core index']
  #allocation1 [shape = 'u32[144,128]{1,0:T(1,128)}', space=vmem, size = 0x12000, scoped, tag = 'internal scratch']
  %s0 = inlined_call_operand.vmem [shape: bf16[128,32], index: 0, kind: input, shape index: {}]
  %s1 = inlined_call_operand.vmem [shape: bf16[128,32], index: 1, kind: input, shape index: {}]
  %s2 = inlined_call_operand.vmem [shape: f32[128,32], index: 2, kind: input, shape index: {}]
  %s3 = inlined_call_operand.vmem [shape: f32[1,128], index: 3, kind: input, shape index: {}]
  %s4 = inlined_call_operand.vmem [shape: f32[128,32], index: 4, kind: output, shape index: {0}]
  %s5 = inlined_call_operand.hbm [shape: s32[1,1,128], index: 5, kind: output, shape index: {1}]
  %s6 = inlined_call_operand.hbm [shape: s32[1,1,128], index: 6, kind: output, shape index: {2}]
  %7 = xla_tuple %s4, %s5, %s6
  %s8 = sld [smem:[#allocation0]]
  $region42: #{tpu_custom_call.1} parent=0
    _
  %s10 = ssub.s32 1, %s8
  %s11 = scalar_select 0, %s10, %s8
  $region1: #{tpu_custom_call.1} parent=0
    #allocation2 [shape = 'u8[512]{0}', space=vmem, size = 0x400, scoped, tag = 'output window, operand 1, single buffered']
    #allocation3 [shape = 's32[1]{0}', space=sflag, size = 0x4, scoped, tag = 'scoped memory for tpu_custom_call.1']
    #allocation4 [shape = 'u8[512]{0}', space=vmem, size = 0x400, scoped, tag = 'output window, operand 2, single buffered']
    #allocation5 [shape = 's32[1]{0}', space=sflag, size = 0x4, scoped, tag = 'scoped memory for tpu_custom_call.1']
    %12 = vsyncpa [#allocation3], 0
    %13 = vsyncpa [#allocation5], 0
    // Predicated region
    $region2: #{tpu_custom_call.1} parent=1 // pred_check
      _
    $region3: #{tpu_custom_call.1} parent=1 // pred_check_branch
      %15 = sbr.rel (0) target = $region5
    $region4: #{tpu_custom_call.1} parent=1 // pred_region
      _
    $region5: #{tpu_custom_call.1} parent=1 // pred_fallthru
      _
    // Predicated region
    $region6: #{tpu_custom_call.1} parent=1 // pred_check
      _
    $region7: #{tpu_custom_call.1} parent=1 // pred_check_branch
      %17 = sbr.rel (0) target = $region9
    $region8: #{tpu_custom_call.1} parent=1 // pred_region
      _
    $region9: #{tpu_custom_call.1} parent=1 // pred_fallthru
      _
    // Predicated region
    $region10: #{tpu_custom_call.1} parent=1 // pred_check
      _
    $region11: #{tpu_custom_call.1} parent=1 // pred_check_branch
      %19 = sbr.rel (0) target = $region13
    $region12: #{tpu_custom_call.1} parent=1 // pred_region
      _
    $region13: #{tpu_custom_call.1} parent=1 // pred_fallthru
      _
    // Predicated region
    $region14: #{tpu_custom_call.1} parent=1 // pred_check
      _
    $region15: #{tpu_custom_call.1} parent=1 // pred_check_branch
      %21 = sbr.rel (0) target = $region17
    $region16: #{tpu_custom_call.1} parent=1 // pred_region
      _
    $region17: #{tpu_custom_call.1} parent=1 // pred_fallthru
      _
    %v23 = vld [vmem:[%s0] sm:$0xf]
    %v24 = vld [vmem:[%s0 + $0x4] sm:$0xf]
    %v25 = vld [vmem:[%s0 + $0x8] sm:$0xf]
    %v26 = vld [vmem:[%s0 + $0xc] sm:$0xf]
    %v27 = vld [vmem:[%s0 + $0x10] sm:$0xf]
    %v28 = vld [vmem:[%s0 + $0x14] sm:$0xf]
    %v29 = vld [vmem:[%s0 + $0x18] sm:$0xf]
    %v30 = vld [vmem:[%s0 + $0x1c] sm:$0xf]
    %v31 = vld [vmem:[%s0 + $0x20] sm:$0xf]
    %v32 = vld [vmem:[%s0 + $0x24] sm:$0xf]
    %v33 = vld [vmem:[%s0 + $0x28] sm:$0xf]
    %v34 = vld [vmem:[%s0 + $0x2c] sm:$0xf]
    %v35 = vld [vmem:[%s0 + $0x30] sm:$0xf]
    %v36 = vld [vmem:[%s0 + $0x34] sm:$0xf]
    %v37 = vld [vmem:[%s0 + $0x38] sm:$0xf]
    %v38 = vld [vmem:[%s0 + $0x3c] sm:$0xf]
    %v39 = vld [vmem:[%s1] sm:$0xf]
    %v40 = vld [vmem:[%s1 + $0x4] sm:$0xf]
    %v41 = vld [vmem:[%s1 + $0x8] sm:$0xf]
    %v42 = vld [vmem:[%s1 + $0xc] sm:$0xf]
    %v43 = vld [vmem:[%s1 + $0x10] sm:$0xf]
    %v44 = vld [vmem:[%s1 + $0x14] sm:$0xf]
    %v45 = vld [vmem:[%s1 + $0x18] sm:$0xf]
    %v46 = vld [vmem:[%s1 + $0x1c] sm:$0xf]
    %v47 = vld [vmem:[%s1 + $0x20] sm:$0xf]
    %v48 = vld [vmem:[%s1 + $0x24] sm:$0xf]
    %v49 = vld [vmem:[%s1 + $0x28] sm:$0xf]
    %v50 = vld [vmem:[%s1 + $0x2c] sm:$0xf]
    %v51 = vld [vmem:[%s1 + $0x30] sm:$0xf]
    %v52 = vld [vmem:[%s1 + $0x34] sm:$0xf]
    %v53 = vld [vmem:[%s1 + $0x38] sm:$0xf]
    %v54 = vld [vmem:[%s1 + $0x3c] sm:$0xf]
    %v71 = vunpack.c.l.b16 %v23
    %v72 = vunpack.c.l.b16 %v24
    %v73 = vunpack.c.l.b16 %v25
    %v74 = vunpack.c.l.b16 %v26
    %v75 = vunpack.c.l.b16 %v27
    %v76 = vunpack.c.l.b16 %v28
    %v77 = vunpack.c.l.b16 %v29
    %v78 = vunpack.c.l.b16 %v30
    %v79 = vunpack.c.l.b16 %v31
    %v80 = vunpack.c.l.b16 %v32
    %v81 = vunpack.c.l.b16 %v33
    %v82 = vunpack.c.l.b16 %v34
    %v83 = vunpack.c.l.b16 %v35
    %v84 = vunpack.c.l.b16 %v36
    %v85 = vunpack.c.l.b16 %v37
    %v86 = vunpack.c.l.b16 %v38
    %v87 = vpack.c.b16 %v72, %v71
    %v88 = vpack.c.b16 %v74, %v73
    %v89 = vpack.c.b16 %v76, %v75
    %v90 = vpack.c.b16 %v78, %v77
    %v91 = vpack.c.b16 %v80, %v79
    %v92 = vpack.c.b16 %v82, %v81
    %v93 = vpack.c.b16 %v84, %v83
    %v94 = vpack.c.b16 %v86, %v85
    %v111 = vunpack.c.l.b16 %v39
    %v112 = vunpack.c.l.b16 %v40
    %v113 = vunpack.c.l.b16 %v41
    %v114 = vunpack.c.l.b16 %v42
    %v115 = vunpack.c.l.b16 %v43
    %v116 = vunpack.c.l.b16 %v44
    %v117 = vunpack.c.l.b16 %v45
    %v118 = vunpack.c.l.b16 %v46
    %v119 = vunpack.c.l.b16 %v47
    %v120 = vunpack.c.l.b16 %v48
    %v121 = vunpack.c.l.b16 %v49
    %v122 = vunpack.c.l.b16 %v50
    %v123 = vunpack.c.l.b16 %v51
    %v124 = vunpack.c.l.b16 %v52
    %v125 = vunpack.c.l.b16 %v53
    %v126 = vunpack.c.l.b16 %v54
    %v127 = vpack.c.b16 %v112, %v111
    %v128 = vpack.c.b16 %v114, %v113
    %v129 = vpack.c.b16 %v116, %v115
    %v130 = vpack.c.b16 %v118, %v117
    %v131 = vpack.c.b16 %v120, %v119
    %v132 = vpack.c.b16 %v122, %v121
    %v133 = vpack.c.b16 %v124, %v123
    %v134 = vpack.c.b16 %v126, %v125
    %vm135 = vcmask 261120
    %v137 = vsel %vm135, %v87, 0
    %v140 = vsel %vm135, %v88, 0
    %v143 = vsel %vm135, %v89, 0
    %v146 = vsel %vm135, %v90, 0
    %v149 = vsel %vm135, %v91, 0
    %v152 = vsel %vm135, %v92, 0
    %v155 = vsel %vm135, %v93, 0
    %v158 = vsel %vm135, %v94, 0
    %v161 = vsel %vm135, %v127, 0
    %v164 = vsel %vm135, %v128, 0
    %v167 = vsel %vm135, %v129, 0
    %v170 = vsel %vm135, %v130, 0
    %v173 = vsel %vm135, %v131, 0
    %v176 = vsel %vm135, %v132, 0
    %v179 = vsel %vm135, %v133, 0
    %v182 = vsel %vm135, %v134, 0
    %184 = vmatprep.subr.bf16.mxu0 0
    %185 = vmatpush1.bf16.xpose.msra.mxu0 %v182
    %186 = vmatprep.subr.bf16.mxu0 0
    %187 = vmatpush1.bf16.xpose.msra.mxu0 %v179
    %188 = vmatprep.subr.bf16.mxu0 0
    %189 = vmatpush1.bf16.xpose.msra.mxu0 %v176
    %190 = vmatprep.subr.bf16.mxu0 0
    %191 = vmatpush1.bf16.xpose.msra.mxu0 %v173
    %192 = vmatprep.subr.bf16.mxu0 0
    %193 = vmatpush1.bf16.xpose.msra.mxu0 %v170
    %194 = vmatprep.subr.bf16.mxu0 0
    %195 = vmatpush1.bf16.xpose.msra.mxu0 %v167
    %196 = vmatprep.subr.bf16.mxu0 0
    %197 = vmatpush1.bf16.xpose.msra.mxu0 %v164
    %198 = vmatprep.subr.bf16.mxu0 0
    %199 = vmatpush1.bf16.xpose.msra.mxu0 %v161
    %200 = vmatprep.subr.bf16.mxu0 0
    %201 = vmatpush2.bf16.xpose.msra.mxu0 0
    %202 = vmatprep.subr.bf16.mxu0 0
    %203 = vmatpush2.bf16.xpose.msra.mxu0 0
    %204 = vmatprep.subr.bf16.mxu0 0
    %205 = vmatpush2.bf16.xpose.msra.mxu0 0
    %206 = vmatprep.subr.bf16.mxu0 0
    %207 = vmatpush2.bf16.xpose.msra.mxu0 0
    %208 = vmatprep.subr.bf16.mxu0 0
    %209 = vmatpush2.bf16.xpose.msra.mxu0 0
    %210 = vmatprep.subr.bf16.mxu0 0
    %211 = vmatpush2.bf16.xpose.msra.mxu0 0
    %212 = vmatprep.subr.bf16.mxu0 0
    %213 = vmatpush2.bf16.xpose.msra.mxu0 0
    %214 = vmatprep.subr.bf16.mxu0 0
    %215 = vmatpush2.bf16.xpose.msra.mxu0 0
    %216 = vmatprep.mubr.bf16.mxu0 0
    %217 = vmatmul.mubr.bf16.gmra.mxu0 %v137
    %v218 = vpop.f32.mrf.mxu0
    %v219 = vadd.f32 0.0, %v218
    %v220 = vpop.f32.mrf.mxu0
    %v221 = vpop.f32.mrf.mxu0
    %v222 = vadd.f32 0.0, %v221
    %v223 = vpop.f32.mrf.mxu0
    %224 = vmatprep.mubr.bf16.mxu0 0
    %225 = vmatmul.mubr.bf16.gmra.mxu0 %v140
    %v226 = vpop.f32.mrf.mxu0
    %v227 = vadd.f32 0.0, %v226
    %v228 = vpop.f32.mrf.mxu0
    %v229 = vpop.f32.mrf.mxu0
    %v230 = vadd.f32 0.0, %v229
    %v231 = vpop.f32.mrf.mxu0
    %232 = vmatprep.mubr.bf16.mxu0 0
    %233 = vmatmul.mubr.bf16.gmra.mxu0 %v143
    %v234 = vpop.f32.mrf.mxu0
    %v235 = vadd.f32 0.0, %v234
    %v236 = vpop.f32.mrf.mxu0
    %v237 = vpop.f32.mrf.mxu0
    %v238 = vadd.f32 0.0, %v237
    %v239 = vpop.f32.mrf.mxu0
    %240 = vmatprep.mubr.bf16.mxu0 0
    %241 = vmatmul.mubr.bf16.gmra.mxu0 %v146
    %v242 = vpop.f32.mrf.mxu0
    %v243 = vadd.f32 0.0, %v242
    %v244 = vpop.f32.mrf.mxu0
    %v245 = vpop.f32.mrf.mxu0
    %v246 = vadd.f32 0.0, %v245
    %v247 = vpop.f32.mrf.mxu0
    %248 = vmatprep.mubr.bf16.mxu0 0
    %249 = vmatmul.mubr.bf16.gmra.mxu0 %v149
    %v250 = vpop.f32.mrf.mxu0
    %v251 = vadd.f32 0.0, %v250
    %v252 = vpop.f32.mrf.mxu0
    %v253 = vpop.f32.mrf.mxu0
    %v254 = vadd.f32 0.0, %v253
    %v255 = vpop.f32.mrf.mxu0
    %256 = vmatprep.mubr.bf16.mxu0 0
    %257 = vmatmul.mubr.bf16.gmra.mxu0 %v152
    %v258 = vpop.f32.mrf.mxu0
    %v259 = vadd.f32 0.0, %v258
    %v260 = vpop.f32.mrf.mxu0
    %v261 = vpop.f32.mrf.mxu0
    %v262 = vadd.f32 0.0, %v261
    %v263 = vpop.f32.mrf.mxu0
    %264 = vmatprep.mubr.bf16.mxu0 0
    %265 = vmatmul.mubr.bf16.gmra.mxu0 %v155
    %v266 = vpop.f32.mrf.mxu0
    %v267 = vadd.f32 0.0, %v266
    %v268 = vpop.f32.mrf.mxu0
    %v269 = vpop.f32.mrf.mxu0
    %v270 = vadd.f32 0.0, %v269
    %v271 = vpop.f32.mrf.mxu0
    %272 = vmatprep.mubr.bf16.mxu0 0
    %273 = vmatmul.mubr.bf16.gmra.mxu0 %v158
    %v274 = vpop.f32.mrf.mxu0
    %v275 = vadd.f32 0.0, %v274
    %v276 = vpop.f32.mrf.mxu0
    %v277 = vpop.f32.mrf.mxu0
    %v278 = vadd.f32 0.0, %v277
    %v279 = vpop.f32.mrf.mxu0
    %280 = vdwg.mxu0
    %v281 = vld [vmem:[%s3] sm:$0x1]
    %v283 = vlaneseq
    %v284 = vshrl.u32 %v283, 7
    %v285 = vsub.s32 0, %v284
    %v286 = vrot.slane %v281, %v285
    %v288 = vsub.f32 %v286, %v219
    %v289 = vsub.f32 %v286, %v222
    %v290 = vsub.f32 %v286, %v227
    %v291 = vsub.f32 %v286, %v230
    %v292 = vsub.f32 %v286, %v235
    %v293 = vsub.f32 %v286, %v238
    %v294 = vsub.f32 %v286, %v243
    %v295 = vsub.f32 %v286, %v246
    %v296 = vsub.f32 %v286, %v251
    %v297 = vsub.f32 %v286, %v254
    %v298 = vsub.f32 %v286, %v259
    %v299 = vsub.f32 %v286, %v262
    %v300 = vsub.f32 %v286, %v267
    %v301 = vsub.f32 %v286, %v270
    %v302 = vsub.f32 %v286, %v275
    %v303 = vsub.f32 %v286, %v278
    %304 = vmin.xlane.f32.xlu0 %v288
    %v305 = vpop.xlane.xlu0 %304
    %306 = vmin.xlane.f32.xlu0 %v289
    %v307 = vpop.xlane.xlu0 %306
    %308 = vmin.xlane.f32.xlu0 %v290
    %v309 = vpop.xlane.xlu0 %308
    %310 = vmin.xlane.f32.xlu0 %v291
    %v311 = vpop.xlane.xlu0 %310
    %312 = vmin.xlane.f32.xlu0 %v292
    %v313 = vpop.xlane.xlu0 %312
    %314 = vmin.xlane.f32.xlu0 %v293
    %v315 = vpop.xlane.xlu0 %314
    %316 = vmin.xlane.f32.xlu0 %v294
    %v317 = vpop.xlane.xlu0 %316
    %318 = vmin.xlane.f32.xlu0 %v295
    %v319 = vpop.xlane.xlu0 %318
    %320 = vmin.xlane.f32.xlu0 %v296
    %v321 = vpop.xlane.xlu0 %320
    %322 = vmin.xlane.f32.xlu0 %v297
    %v323 = vpop.xlane.xlu0 %322
    %324 = vmin.xlane.f32.xlu0 %v298
    %v325 = vpop.xlane.xlu0 %324
    %326 = vmin.xlane.f32.xlu0 %v299
    %v327 = vpop.xlane.xlu0 %326
    %328 = vmin.xlane.f32.xlu0 %v300
    %v329 = vpop.xlane.xlu0 %328
    %330 = vmin.xlane.f32.xlu0 %v301
    %v331 = vpop.xlane.xlu0 %330
    %332 = vmin.xlane.f32.xlu0 %v302
    %v333 = vpop.xlane.xlu0 %332
    %334 = vmin.xlane.f32.xlu0 %v303
    %v335 = vpop.xlane.xlu0 %334
    %v336 = vlaneseq
    %v337 = vand.u32 %v336, 127
    %vm338 = vcmp.le.f32.partialorder %v288, %v305
    %vm339 = vcmp.le.f32.partialorder %v289, %v307
    %vm340 = vcmp.le.f32.partialorder %v290, %v309
    %vm341 = vcmp.le.f32.partialorder %v291, %v311
    %vm342 = vcmp.le.f32.partialorder %v292, %v313
    %vm343 = vcmp.le.f32.partialorder %v293, %v315
    %vm344 = vcmp.le.f32.partialorder %v294, %v317
    %vm345 = vcmp.le.f32.partialorder %v295, %v319
    %vm346 = vcmp.le.f32.partialorder %v296, %v321
    %vm347 = vcmp.le.f32.partialorder %v297, %v323
    %vm348 = vcmp.le.f32.partialorder %v298, %v325
    %vm349 = vcmp.le.f32.partialorder %v299, %v327
    %vm350 = vcmp.le.f32.partialorder %v300, %v329
    %vm351 = vcmp.le.f32.partialorder %v301, %v331
    %vm352 = vcmp.le.f32.partialorder %v302, %v333
    %vm353 = vcmp.le.f32.partialorder %v303, %v335
    %v354 = vsel %vm338, %v337, 128
    %v355 = vsel %vm339, %v337, 128
    %v356 = vsel %vm340, %v337, 128
    %v357 = vsel %vm341, %v337, 128
    %v358 = vsel %vm342, %v337, 128
    %v359 = vsel %vm343, %v337, 128
    %v360 = vsel %vm344, %v337, 128
    %v361 = vsel %vm345, %v337, 128
    %v362 = vsel %vm346, %v337, 128
    %v363 = vsel %vm347, %v337, 128
    %v364 = vsel %vm348, %v337, 128
    %v365 = vsel %vm349, %v337, 128
    %v366 = vsel %vm350, %v337, 128
    %v367 = vsel %vm351, %v337, 128
    %v368 = vsel %vm352, %v337, 128
    %v369 = vsel %vm353, %v337, 128
    %v370 = vand.u32 %v354, 65535
    %v371 = vshra.s32 %v354, 16
    %v372 = vcvt.s32.f32 %v370
    %v373 = vcvt.s32.f32 %v371
    %374 = vmin.xlane.f32.xlu0 %v373
    %v375 = vpop.xlane.xlu0 %374
    %vm376 = vcmp.eq.f32.partialorder %v373, %v375
    %v377 = vsel %vm376, %v372, inf
    %378 = vmin.xlane.f32.xlu0 %v377
    %v379 = vpop.xlane.xlu0 %378
    %v380 = vcvt.f32.s32 %v379
    %v381 = vcvt.f32.s32 %v375
    %v382 = vshll.u32 %v381, 16
    %v383 = vadd.s32 %v382, %v380
    %v384 = vand.u32 %v355, 65535
    %v385 = vshra.s32 %v355, 16
    %v386 = vcvt.s32.f32 %v384
    %v387 = vcvt.s32.f32 %v385
    %388 = vmin.xlane.f32.xlu0 %v387
    %v389 = vpop.xlane.xlu0 %388
    %vm390 = vcmp.eq.f32.partialorder %v387, %v389
    %v391 = vsel %vm390, %v386, inf
    %392 = vmin.xlane.f32.xlu0 %v391
    %v393 = vpop.xlane.xlu0 %392
    %v394 = vcvt.f32.s32 %v393
    %v395 = vcvt.f32.s32 %v389
    %v396 = vshll.u32 %v395, 16
    %v397 = vadd.s32 %v396, %v394
    %v398 = vand.u32 %v356, 65535
    %v399 = vshra.s32 %v356, 16
    %v400 = vcvt.s32.f32 %v398
    %v401 = vcvt.s32.f32 %v399
    %402 = vmin.xlane.f32.xlu0 %v401
    %v403 = vpop.xlane.xlu0 %402
    %vm404 = vcmp.eq.f32.partialorder %v401, %v403
    %v405 = vsel %vm404, %v400, inf
    %406 = vmin.xlane.f32.xlu0 %v405
    %v407 = vpop.xlane.xlu0 %406
    %v408 = vcvt.f32.s32 %v407
    %v409 = vcvt.f32.s32 %v403
    %v410 = vshll.u32 %v409, 16
    %v411 = vadd.s32 %v410, %v408
    %v412 = vand.u32 %v357, 65535
    %v413 = vshra.s32 %v357, 16
    %v414 = vcvt.s32.f32 %v412
    %v415 = vcvt.s32.f32 %v413
    %416 = vmin.xlane.f32.xlu0 %v415
    %v417 = vpop.xlane.xlu0 %416
    %vm418 = vcmp.eq.f32.partialorder %v415, %v417
    %v419 = vsel %vm418, %v414, inf
    %420 = vmin.xlane.f32.xlu0 %v419
    %v421 = vpop.xlane.xlu0 %420
    %v422 = vcvt.f32.s32 %v421
    %v423 = vcvt.f32.s32 %v417
    %v424 = vshll.u32 %v423, 16
    %v425 = vadd.s32 %v424, %v422
    %v426 = vand.u32 %v358, 65535
    %v427 = vshra.s32 %v358, 16
    %v428 = vcvt.s32.f32 %v426
    %v429 = vcvt.s32.f32 %v427
    %430 = vmin.xlane.f32.xlu0 %v429
    %v431 = vpop.xlane.xlu0 %430
    %vm432 = vcmp.eq.f32.partialorder %v429, %v431
    %v433 = vsel %vm432, %v428, inf
    %434 = vmin.xlane.f32.xlu0 %v433
    %v435 = vpop.xlane.xlu0 %434
    %v436 = vcvt.f32.s32 %v435
    %v437 = vcvt.f32.s32 %v431
    %v438 = vshll.u32 %v437, 16
    %v439 = vadd.s32 %v438, %v436
    %v440 = vand.u32 %v359, 65535
    %v441 = vshra.s32 %v359, 16
    %v442 = vcvt.s32.f32 %v440
    %v443 = vcvt.s32.f32 %v441
    %444 = vmin.xlane.f32.xlu0 %v443
    %v445 = vpop.xlane.xlu0 %444
    %vm446 = vcmp.eq.f32.partialorder %v443, %v445
    %v447 = vsel %vm446, %v442, inf
    %448 = vmin.xlane.f32.xlu0 %v447
    %v449 = vpop.xlane.xlu0 %448
    %v450 = vcvt.f32.s32 %v449
    %v451 = vcvt.f32.s32 %v445
    %v452 = vshll.u32 %v451, 16
    %v453 = vadd.s32 %v452, %v450
    %v454 = vand.u32 %v360, 65535
    %v455 = vshra.s32 %v360, 16
    %v456 = vcvt.s32.f32 %v454
    %v457 = vcvt.s32.f32 %v455
    %458 = vmin.xlane.f32.xlu0 %v457
    %v459 = vpop.xlane.xlu0 %458
    %vm460 = vcmp.eq.f32.partialorder %v457, %v459
    %v461 = vsel %vm460, %v456, inf
    %462 = vmin.xlane.f32.xlu0 %v461
    %v463 = vpop.xlane.xlu0 %462
    %v464 = vcvt.f32.s32 %v463
    %v465 = vcvt.f32.s32 %v459
    %v466 = vshll.u32 %v465, 16
    %v467 = vadd.s32 %v466, %v464
    %v468 = vand.u32 %v361, 65535
    %v469 = vshra.s32 %v361, 16
    %v470 = vcvt.s32.f32 %v468
    %v471 = vcvt.s32.f32 %v469
    %472 = vmin.xlane.f32.xlu0 %v471
    %v473 = vpop.xlane.xlu0 %472
    %vm474 = vcmp.eq.f32.partialorder %v471, %v473
    %v475 = vsel %vm474, %v470, inf
    %476 = vmin.xlane.f32.xlu0 %v475
    %v477 = vpop.xlane.xlu0 %476
    %v478 = vcvt.f32.s32 %v477
    %v479 = vcvt.f32.s32 %v473
    %v480 = vshll.u32 %v479, 16
    %v481 = vadd.s32 %v480, %v478
    %v482 = vand.u32 %v362, 65535
    %v483 = vshra.s32 %v362, 16
    %v484 = vcvt.s32.f32 %v482
    %v485 = vcvt.s32.f32 %v483
    %486 = vmin.xlane.f32.xlu0 %v485
    %v487 = vpop.xlane.xlu0 %486
    %vm488 = vcmp.eq.f32.partialorder %v485, %v487
    %v489 = vsel %vm488, %v484, inf
    %490 = vmin.xlane.f32.xlu0 %v489
    %v491 = vpop.xlane.xlu0 %490
    %v492 = vcvt.f32.s32 %v491
    %v493 = vcvt.f32.s32 %v487
    %v494 = vshll.u32 %v493, 16
    %v495 = vadd.s32 %v494, %v492
    %v496 = vand.u32 %v363, 65535
    %v497 = vshra.s32 %v363, 16
    %v498 = vcvt.s32.f32 %v496
    %v499 = vcvt.s32.f32 %v497
    %500 = vmin.xlane.f32.xlu0 %v499
    %v501 = vpop.xlane.xlu0 %500
    %vm502 = vcmp.eq.f32.partialorder %v499, %v501
    %v503 = vsel %vm502, %v498, inf
    %504 = vmin.xlane.f32.xlu0 %v503
    %v505 = vpop.xlane.xlu0 %504
    %v506 = vcvt.f32.s32 %v505
    %v507 = vcvt.f32.s32 %v501
    %v508 = vshll.u32 %v507, 16
    %v509 = vadd.s32 %v508, %v506
    %v510 = vand.u32 %v364, 65535
    %v511 = vshra.s32 %v364, 16
    %v512 = vcvt.s32.f32 %v510
    %v513 = vcvt.s32.f32 %v511
    %514 = vmin.xlane.f32.xlu0 %v513
    %v515 = vpop.xlane.xlu0 %514
    %vm516 = vcmp.eq.f32.partialorder %v513, %v515
    %v517 = vsel %vm516, %v512, inf
    %518 = vmin.xlane.f32.xlu0 %v517
    %v519 = vpop.xlane.xlu0 %518
    %v520 = vcvt.f32.s32 %v519
    %v521 = vcvt.f32.s32 %v515
    %v522 = vshll.u32 %v521, 16
    %v523 = vadd.s32 %v522, %v520
    %v524 = vand.u32 %v365, 65535
    %v525 = vshra.s32 %v365, 16
    %v526 = vcvt.s32.f32 %v524
    %v527 = vcvt.s32.f32 %v525
    %528 = vmin.xlane.f32.xlu0 %v527
    %v529 = vpop.xlane.xlu0 %528
    %vm530 = vcmp.eq.f32.partialorder %v527, %v529
    %v531 = vsel %vm530, %v526, inf
    %532 = vmin.xlane.f32.xlu0 %v531
    %v533 = vpop.xlane.xlu0 %532
    %v534 = vcvt.f32.s32 %v533
    %v535 = vcvt.f32.s32 %v529
    %v536 = vshll.u32 %v535, 16
    %v537 = vadd.s32 %v536, %v534
    %v538 = vand.u32 %v366, 65535
    %v539 = vshra.s32 %v366, 16
    %v540 = vcvt.s32.f32 %v538
    %v541 = vcvt.s32.f32 %v539
    %542 = vmin.xlane.f32.xlu0 %v541
    %v543 = vpop.xlane.xlu0 %542
    %vm544 = vcmp.eq.f32.partialorder %v541, %v543
    %v545 = vsel %vm544, %v540, inf
    %546 = vmin.xlane.f32.xlu0 %v545
    %v547 = vpop.xlane.xlu0 %546
    %v548 = vcvt.f32.s32 %v547
    %v549 = vcvt.f32.s32 %v543
    %v550 = vshll.u32 %v549, 16
    %v551 = vadd.s32 %v550, %v548
    %v552 = vand.u32 %v367, 65535
    %v553 = vshra.s32 %v367, 16
    %v554 = vcvt.s32.f32 %v552
    %v555 = vcvt.s32.f32 %v553
    %556 = vmin.xlane.f32.xlu0 %v555
    %v557 = vpop.xlane.xlu0 %556
    %vm558 = vcmp.eq.f32.partialorder %v555, %v557
    %v559 = vsel %vm558, %v554, inf
    %560 = vmin.xlane.f32.xlu0 %v559
    %v561 = vpop.xlane.xlu0 %560
    %v562 = vcvt.f32.s32 %v561
    %v563 = vcvt.f32.s32 %v557
    %v564 = vshll.u32 %v563, 16
    %v565 = vadd.s32 %v564, %v562
    %v566 = vand.u32 %v368, 65535
    %v567 = vshra.s32 %v368, 16
    %v568 = vcvt.s32.f32 %v566
    %v569 = vcvt.s32.f32 %v567
    %570 = vmin.xlane.f32.xlu0 %v569
    %v571 = vpop.xlane.xlu0 %570
    %vm572 = vcmp.eq.f32.partialorder %v569, %v571
    %v573 = vsel %vm572, %v568, inf
    %574 = vmin.xlane.f32.xlu0 %v573
    %v575 = vpop.xlane.xlu0 %574
    %v576 = vcvt.f32.s32 %v575
    %v577 = vcvt.f32.s32 %v571
    %v578 = vshll.u32 %v577, 16
    %v579 = vadd.s32 %v578, %v576
    %v580 = vand.u32 %v369, 65535
    %v581 = vshra.s32 %v369, 16
    %v582 = vcvt.s32.f32 %v580
    %v583 = vcvt.s32.f32 %v581
    %584 = vmin.xlane.f32.xlu0 %v583
    %v585 = vpop.xlane.xlu0 %584
    %vm586 = vcmp.eq.f32.partialorder %v583, %v585
    %v587 = vsel %vm586, %v582, inf
    %588 = vmin.xlane.f32.xlu0 %v587
    %v589 = vpop.xlane.xlu0 %588
    %v590 = vcvt.f32.s32 %v589
    %v591 = vcvt.f32.s32 %v585
    %v592 = vshll.u32 %v591, 16
    %v593 = vadd.s32 %v592, %v590
    %vm594 = vcmp.eq.s32.totalorder %v337, %v383
    %vm595 = vcmp.eq.s32.totalorder %v337, %v397
    %vm596 = vcmp.eq.s32.totalorder %v337, %v411
    %vm597 = vcmp.eq.s32.totalorder %v337, %v425
    %vm598 = vcmp.eq.s32.totalorder %v337, %v439
    %vm599 = vcmp.eq.s32.totalorder %v337, %v453
    %vm600 = vcmp.eq.s32.totalorder %v337, %v467
    %vm601 = vcmp.eq.s32.totalorder %v337, %v481
    %vm602 = vcmp.eq.s32.totalorder %v337, %v495
    %vm603 = vcmp.eq.s32.totalorder %v337, %v509
    %vm604 = vcmp.eq.s32.totalorder %v337, %v523
    %vm605 = vcmp.eq.s32.totalorder %v337, %v537
    %vm606 = vcmp.eq.s32.totalorder %v337, %v551
    %vm607 = vcmp.eq.s32.totalorder %v337, %v565
    %vm608 = vcmp.eq.s32.totalorder %v337, %v579
    %vm609 = vcmp.eq.s32.totalorder %v337, %v593
    %v610 = vsel %vm594, 1, 0
    %v611 = vsel %vm595, 1, 0
    %v612 = vsel %vm596, 1, 0
    %v613 = vsel %vm597, 1, 0
    %v614 = vsel %vm598, 1, 0
    %v615 = vsel %vm599, 1, 0
    %v616 = vsel %vm600, 1, 0
    %v617 = vsel %vm601, 1, 0
    %v618 = vsel %vm602, 1, 0
    %v619 = vsel %vm603, 1, 0
    %v620 = vsel %vm604, 1, 0
    %v621 = vsel %vm605, 1, 0
    %v622 = vsel %vm606, 1, 0
    %v623 = vsel %vm607, 1, 0
    %v624 = vsel %vm608, 1, 0
    %v625 = vsel %vm609, 1, 0
    %v626 = vcvt.s32.f32 %v610
    %v627 = vcvt.s32.f32 %v611
    %v628 = vcvt.s32.f32 %v612
    %v629 = vcvt.s32.f32 %v613
    %v630 = vcvt.s32.f32 %v614
    %v631 = vcvt.s32.f32 %v615
    %v632 = vcvt.s32.f32 %v616
    %v633 = vcvt.s32.f32 %v617
    %v634 = vcvt.s32.f32 %v618
    %v635 = vcvt.s32.f32 %v619
    %v636 = vcvt.s32.f32 %v620
    %v637 = vcvt.s32.f32 %v621
    %v638 = vcvt.s32.f32 %v622
    %v639 = vcvt.s32.f32 %v623
    %v640 = vcvt.s32.f32 %v624
    %v641 = vcvt.s32.f32 %v625
    %v642 = vld [vmem:[%s2] sm:$0xff]
    %v643 = vld [vmem:[%s2 + $0x8] sm:$0xff]
    %v644 = vld [vmem:[%s2 + $0x10] sm:$0xff]
    %v645 = vld [vmem:[%s2 + $0x18] sm:$0xff]
    %v646 = vld [vmem:[%s2 + $0x20] sm:$0xff]
    %v647 = vld [vmem:[%s2 + $0x28] sm:$0xff]
    %v648 = vld [vmem:[%s2 + $0x30] sm:$0xff]
    %v649 = vld [vmem:[%s2 + $0x38] sm:$0xff]
    %v650 = vld [vmem:[%s2 + $0x40] sm:$0xff]
    %v651 = vld [vmem:[%s2 + $0x48] sm:$0xff]
    %v652 = vld [vmem:[%s2 + $0x50] sm:$0xff]
    %v653 = vld [vmem:[%s2 + $0x58] sm:$0xff]
    %v654 = vld [vmem:[%s2 + $0x60] sm:$0xff]
    %v655 = vld [vmem:[%s2 + $0x68] sm:$0xff]
    %v656 = vld [vmem:[%s2 + $0x70] sm:$0xff]
    %v657 = vld [vmem:[%s2 + $0x78] sm:$0xff]
    %658 = vmatprep.subr.mxu0 0.0
    %659 = vmatpush1.msra.mxu0 %v657
    %660 = vmatprep.subr.mxu0 0.0
    %661 = vmatpush1.msra.mxu0 %v656
    %662 = vmatprep.subr.mxu0 0.0
    %663 = vmatpush1.msra.mxu0 %v655
    %664 = vmatprep.subr.mxu0 0.0
    %665 = vmatpush1.msra.mxu0 %v654
    %666 = vmatprep.subr.mxu0 0.0
    %667 = vmatpush1.msra.mxu0 %v653
    %668 = vmatprep.subr.mxu0 0.0
    %669 = vmatpush1.msra.mxu0 %v652
    %670 = vmatprep.subr.mxu0 0.0
    %671 = vmatpush1.msra.mxu0 %v651
    %672 = vmatprep.subr.mxu0 0.0
    %673 = vmatpush1.msra.mxu0 %v650
    %674 = vmatprep.subr.mxu0 0.0
    %675 = vmatpush1.msra.mxu0 %v649
    %676 = vmatprep.subr.mxu0 0.0
    %677 = vmatpush1.msra.mxu0 %v648
    %678 = vmatprep.subr.mxu0 0.0
    %679 = vmatpush1.msra.mxu0 %v647
    %680 = vmatprep.subr.mxu0 0.0
    %681 = vmatpush1.msra.mxu0 %v646
    %682 = vmatprep.subr.mxu0 0.0
    %683 = vmatpush1.msra.mxu0 %v645
    %684 = vmatprep.subr.mxu0 0.0
    %685 = vmatpush1.msra.mxu0 %v644
    %686 = vmatprep.subr.mxu0 0.0
    %687 = vmatpush1.msra.mxu0 %v643
    %688 = vmatprep.subr.mxu0 0.0
    %689 = vmatpush1.msra.mxu0 %v642
    %690 = vmatprep.subr.mxu0 0.0
    %691 = vmatpush2.msra.mxu0 0.0
    %692 = vmatprep.subr.mxu0 0.0
    %693 = vmatpush2.msra.mxu0 0.0
    %694 = vmatprep.subr.mxu0 0.0
    %695 = vmatpush2.msra.mxu0 0.0
    %696 = vmatprep.subr.mxu0 0.0
    %697 = vmatpush2.msra.mxu0 0.0
    %698 = vmatprep.subr.mxu0 0.0
    %699 = vmatpush2.msra.mxu0 0.0
    %700 = vmatprep.subr.mxu0 0.0
    %701 = vmatpush2.msra.mxu0 0.0
    %702 = vmatprep.subr.mxu0 0.0
    %703 = vmatpush2.msra.mxu0 0.0
    %704 = vmatprep.subr.mxu0 0.0
    %705 = vmatpush2.msra.mxu0 0.0
    %706 = vmatprep.subr.mxu0 0.0
    %707 = vmatpush2.msra.mxu0 0.0
    %708 = vmatprep.subr.mxu0 0.0
    %709 = vmatpush2.msra.mxu0 0.0
    %710 = vmatprep.subr.mxu0 0.0
    %711 = vmatpush2.msra.mxu0 0.0
    %712 = vmatprep.subr.mxu0 0.0
    %713 = vmatpush2.msra.mxu0 0.0
    %714 = vmatprep.subr.mxu0 0.0
    %715 = vmatpush2.msra.mxu0 0.0
    %716 = vmatprep.subr.mxu0 0.0
    %717 = vmatpush2.msra.mxu0 0.0
    %718 = vmatprep.subr.mxu0 0.0
    %719 = vmatpush2.msra.mxu0 0.0
    %720 = vmatprep.subr.mxu0 0.0
    %721 = vmatpush2.msra.mxu0 0.0
    %722 = vmatprep.mubr.f32.mxu0 0.0
    %723 = vmatmul.mubr.f32.gmra.mxu0 %v626
    %v724 = vpop.f32.mrf.mxu0
    %v725 = vadd.f32 0.0, %v724
    %v726 = vpop.f32.mrf.mxu0
    %727 = vmatprep.mubr.f32.mxu0 0.0
    %728 = vmatmul.mubr.f32.gmra.mxu0 %v627
    %v729 = vpop.f32.mrf.mxu0
    %v730 = vadd.f32 0.0, %v729
    %v731 = vpop.f32.mrf.mxu0
    %732 = vmatprep.mubr.f32.mxu0 0.0
    %733 = vmatmul.mubr.f32.gmra.mxu0 %v628
    %v734 = vpop.f32.mrf.mxu0
    %v735 = vadd.f32 0.0, %v734
    %v736 = vpop.f32.mrf.mxu0
    %737 = vmatprep.mubr.f32.mxu0 0.0
    %738 = vmatmul.mubr.f32.gmra.mxu0 %v629
    %v739 = vpop.f32.mrf.mxu0
    %v740 = vadd.f32 0.0, %v739
    %v741 = vpop.f32.mrf.mxu0
    %742 = vmatprep.mubr.f32.mxu0 0.0
    %743 = vmatmul.mubr.f32.gmra.mxu0 %v630
    %v744 = vpop.f32.mrf.mxu0
    %v745 = vadd.f32 0.0, %v744
    %v746 = vpop.f32.mrf.mxu0
    %747 = vmatprep.mubr.f32.mxu0 0.0
    %748 = vmatmul.mubr.f32.gmra.mxu0 %v631
    %v749 = vpop.f32.mrf.mxu0
    %v750 = vadd.f32 0.0, %v749
    %v751 = vpop.f32.mrf.mxu0
    %752 = vmatprep.mubr.f32.mxu0 0.0
    %753 = vmatmul.mubr.f32.gmra.mxu0 %v632
    %v754 = vpop.f32.mrf.mxu0
    %v755 = vadd.f32 0.0, %v754
    %v756 = vpop.f32.mrf.mxu0
    %757 = vmatprep.mubr.f32.mxu0 0.0
    %758 = vmatmul.mubr.f32.gmra.mxu0 %v633
    %v759 = vpop.f32.mrf.mxu0
    %v760 = vadd.f32 0.0, %v759
    %v761 = vpop.f32.mrf.mxu0
    %762 = vmatprep.mubr.f32.mxu0 0.0
    %763 = vmatmul.mubr.f32.gmra.mxu0 %v634
    %v764 = vpop.f32.mrf.mxu0
    %v765 = vadd.f32 0.0, %v764
    %v766 = vpop.f32.mrf.mxu0
    %767 = vmatprep.mubr.f32.mxu0 0.0
    %768 = vmatmul.mubr.f32.gmra.mxu0 %v635
    %v769 = vpop.f32.mrf.mxu0
    %v770 = vadd.f32 0.0, %v769
    %v771 = vpop.f32.mrf.mxu0
    %772 = vmatprep.mubr.f32.mxu0 0.0
    %773 = vmatmul.mubr.f32.gmra.mxu0 %v636
    %v774 = vpop.f32.mrf.mxu0
    %v775 = vadd.f32 0.0, %v774
    %v776 = vpop.f32.mrf.mxu0
    %777 = vmatprep.mubr.f32.mxu0 0.0
    %778 = vmatmul.mubr.f32.gmra.mxu0 %v637
    %v779 = vpop.f32.mrf.mxu0
    %v780 = vadd.f32 0.0, %v779
    %v781 = vpop.f32.mrf.mxu0
    %782 = vmatprep.mubr.f32.mxu0 0.0
    %783 = vmatmul.mubr.f32.gmra.mxu0 %v638
    %v784 = vpop.f32.mrf.mxu0
    %v785 = vadd.f32 0.0, %v784
    %v786 = vpop.f32.mrf.mxu0
    %787 = vmatprep.mubr.f32.mxu0 0.0
    %788 = vmatmul.mubr.f32.gmra.mxu0 %v639
    %v789 = vpop.f32.mrf.mxu0
    %v790 = vadd.f32 0.0, %v789
    %v791 = vpop.f32.mrf.mxu0
    %792 = vmatprep.mubr.f32.mxu0 0.0
    %793 = vmatmul.mubr.f32.gmra.mxu0 %v640
    %v794 = vpop.f32.mrf.mxu0
    %v795 = vadd.f32 0.0, %v794
    %v796 = vpop.f32.mrf.mxu0
    %797 = vmatprep.mubr.f32.mxu0 0.0
    %798 = vmatmul.mubr.f32.gmra.mxu0 %v641
    %v799 = vpop.f32.mrf.mxu0
    %v800 = vadd.f32 0.0, %v799
    %v801 = vpop.f32.mrf.mxu0
    %802 = vdwg.mxu0
    %803 = vst.msk [vmem:[%s4] sm:$0xff] %vm135, %v725
    %804 = vst.msk [vmem:[%s4 + $0x8] sm:$0xff] %vm135, %v730
    %805 = vst.msk [vmem:[%s4 + $0x10] sm:$0xff] %vm135, %v735
    %806 = vst.msk [vmem:[%s4 + $0x18] sm:$0xff] %vm135, %v740
    %807 = vst.msk [vmem:[%s4 + $0x20] sm:$0xff] %vm135, %v745
    %808 = vst.msk [vmem:[%s4 + $0x28] sm:$0xff] %vm135, %v750
    %809 = vst.msk [vmem:[%s4 + $0x30] sm:$0xff] %vm135, %v755
    %810 = vst.msk [vmem:[%s4 + $0x38] sm:$0xff] %vm135, %v760
    %811 = vst.msk [vmem:[%s4 + $0x40] sm:$0xff] %vm135, %v765
    %812 = vst.msk [vmem:[%s4 + $0x48] sm:$0xff] %vm135, %v770
    %813 = vst.msk [vmem:[%s4 + $0x50] sm:$0xff] %vm135, %v775
    %814 = vst.msk [vmem:[%s4 + $0x58] sm:$0xff] %vm135, %v780
    %815 = vst.msk [vmem:[%s4 + $0x60] sm:$0xff] %vm135, %v785
    %816 = vst.msk [vmem:[%s4 + $0x68] sm:$0xff] %vm135, %v790
    %817 = vst.msk [vmem:[%s4 + $0x70] sm:$0xff] %vm135, %v795
    %818 = vst.msk [vmem:[%s4 + $0x78] sm:$0xff] %vm135, %v800
    %819 = vxpose.xlu0.b32.start [1/16] %v383, 128
    %820 = vxpose.xlu0.b32.cont [2/16] %v397, 128
    %821 = vxpose.xlu0.b32.cont [3/16] %v411, 128
    %822 = vxpose.xlu0.b32.cont [4/16] %v425, 128
    %823 = vxpose.xlu0.b32.cont [5/16] %v439, 128
    %824 = vxpose.xlu0.b32.cont [6/16] %v453, 128
    %825 = vxpose.xlu0.b32.cont [7/16] %v467, 128
    %826 = vxpose.xlu0.b32.cont [8/16] %v481, 128
    %827 = vxpose.xlu0.b32.cont [9/16] %v495, 128
    %828 = vxpose.xlu0.b32.cont [10/16] %v509, 128
    %829 = vxpose.xlu0.b32.cont [11/16] %v523, 128
    %830 = vxpose.xlu0.b32.cont [12/16] %v537, 128
    %831 = vxpose.xlu0.b32.cont [13/16] %v551, 128
    %832 = vxpose.xlu0.b32.cont [14/16] %v565, 128
    %833 = vxpose.xlu0.b32.cont [15/16] %v579, 128
    %834 = vxpose.xlu0.b32.end [16/16] %v593, 128
    %v835 = vpop.trf.xlu0
    %v836 = vpop.trf.xlu0
    %v837 = vpop.trf.xlu0
    %v838 = vpop.trf.xlu0
    %v839 = vpop.trf.xlu0
    %v840 = vpop.trf.xlu0
    %v841 = vpop.trf.xlu0
    %v842 = vpop.trf.xlu0
    %v843 = vpop.trf.xlu0
    %v844 = vpop.trf.xlu0
    %v845 = vpop.trf.xlu0
    %v846 = vpop.trf.xlu0
    %v847 = vpop.trf.xlu0
    %v848 = vpop.trf.xlu0
    %v849 = vpop.trf.xlu0
    %v850 = vpop.trf.xlu0
    %851 = vst [vmem:[#allocation2] sm:$0x1] %v835
    %s852 = smul.u32 0, 128
    %v853 = vlaneseq
    %v854 = vshrl.u32 %v853, 7
    %v855 = vadd.s32 %v854, 8
    %v856 = vadd.s32 %v854, 16
    %v857 = vadd.s32 %v854, 24
    %v858 = vadd.s32 %v854, 32
    %v859 = vadd.s32 %v854, 40
    %v860 = vadd.s32 %v854, 48
    %v861 = vadd.s32 %v854, 56
    %v862 = vadd.s32 %v854, 64
    %v863 = vadd.s32 %v854, 72
    %v864 = vadd.s32 %v854, 80
    %v865 = vadd.s32 %v854, 88
    %v866 = vadd.s32 %v854, 96
    %v867 = vadd.s32 %v854, 104
    %v868 = vadd.s32 %v854, 112
    %v869 = vadd.s32 %v854, 120
    %v870 = vstv %s852
    %v871 = vadd.s32 %v870, %v854
    %v872 = vadd.s32 %v870, %v855
    %v873 = vadd.s32 %v870, %v856
    %v874 = vadd.s32 %v870, %v857
    %v875 = vadd.s32 %v870, %v858
    %v876 = vadd.s32 %v870, %v859
    %v877 = vadd.s32 %v870, %v860
    %v878 = vadd.s32 %v870, %v861
    %v879 = vadd.s32 %v870, %v862
    %v880 = vadd.s32 %v870, %v863
    %v881 = vadd.s32 %v870, %v864
    %v882 = vadd.s32 %v870, %v865
    %v883 = vadd.s32 %v870, %v866
    %v884 = vadd.s32 %v870, %v867
    %v885 = vadd.s32 %v870, %v868
    %v886 = vadd.s32 %v870, %v869
    %vm887 = vcmp.lt.s32.totalorder %v871, 128
    %vm888 = vcmp.lt.s32.totalorder %v872, 128
    %vm889 = vcmp.lt.s32.totalorder %v873, 128
    %vm890 = vcmp.lt.s32.totalorder %v874, 128
    %vm891 = vcmp.lt.s32.totalorder %v875, 128
    %vm892 = vcmp.lt.s32.totalorder %v876, 128
    %vm893 = vcmp.lt.s32.totalorder %v877, 128
    %vm894 = vcmp.lt.s32.totalorder %v878, 128
    %vm895 = vcmp.lt.s32.totalorder %v879, 128
    %vm896 = vcmp.lt.s32.totalorder %v880, 128
    %vm897 = vcmp.lt.s32.totalorder %v881, 128
    %vm898 = vcmp.lt.s32.totalorder %v882, 128
    %vm899 = vcmp.lt.s32.totalorder %v883, 128
    %vm900 = vcmp.lt.s32.totalorder %v884, 128
    %vm901 = vcmp.lt.s32.totalorder %v885, 128
    %vm902 = vcmp.lt.s32.totalorder %v886, 128
    %v903 = vsel %vm887, 1, 0
    %v904 = vsel %vm888, 1, 0
    %v905 = vsel %vm889, 1, 0
    %v906 = vsel %vm890, 1, 0
    %v907 = vsel %vm891, 1, 0
    %v908 = vsel %vm892, 1, 0
    %v909 = vsel %vm893, 1, 0
    %v910 = vsel %vm894, 1, 0
    %v911 = vsel %vm895, 1, 0
    %v912 = vsel %vm896, 1, 0
    %v913 = vsel %vm897, 1, 0
    %v914 = vsel %vm898, 1, 0
    %v915 = vsel %vm899, 1, 0
    %v916 = vsel %vm900, 1, 0
    %v917 = vsel %vm901, 1, 0
    %v918 = vsel %vm902, 1, 0
    %v919 = vcvt.s32.f32 %v903
    %v920 = vcvt.s32.f32 %v904
    %v921 = vcvt.s32.f32 %v905
    %v922 = vcvt.s32.f32 %v906
    %v923 = vcvt.s32.f32 %v907
    %v924 = vcvt.s32.f32 %v908
    %v925 = vcvt.s32.f32 %v909
    %v926 = vcvt.s32.f32 %v910
    %v927 = vcvt.s32.f32 %v911
    %v928 = vcvt.s32.f32 %v912
    %v929 = vcvt.s32.f32 %v913
    %v930 = vcvt.s32.f32 %v914
    %v931 = vcvt.s32.f32 %v915
    %v932 = vcvt.s32.f32 %v916
    %v933 = vcvt.s32.f32 %v917
    %v934 = vcvt.s32.f32 %v918
    %v935 = vmul.f32 %v626, %v919
    %v936 = vmul.f32 %v627, %v920
    %v937 = vmul.f32 %v628, %v921
    %v938 = vmul.f32 %v629, %v922
    %v939 = vmul.f32 %v630, %v923
    %v940 = vmul.f32 %v631, %v924
    %v941 = vmul.f32 %v632, %v925
    %v942 = vmul.f32 %v633, %v926
    %v943 = vmul.f32 %v634, %v927
    %v944 = vmul.f32 %v635, %v928
    %v945 = vmul.f32 %v636, %v929
    %v946 = vmul.f32 %v637, %v930
    %v947 = vmul.f32 %v638, %v931
    %v948 = vmul.f32 %v639, %v932
    %v949 = vmul.f32 %v640, %v933
    %v950 = vmul.f32 %v641, %v934
    %v951 = vadd.f32 %v935, %v936
    %v952 = vadd.f32 %v951, %v937
    %v953 = vadd.f32 %v952, %v938
    %v954 = vadd.f32 %v953, %v939
    %v955 = vadd.f32 %v954, %v940
    %v956 = vadd.f32 %v955, %v941
    %v957 = vadd.f32 %v956, %v942
    %v958 = vadd.f32 %v957, %v943
    %v959 = vadd.f32 %v958, %v944
    %v960 = vadd.f32 %v959, %v945
    %v961 = vadd.f32 %v960, %v946
    %v962 = vadd.f32 %v961, %v947
    %v963 = vadd.f32 %v962, %v948
    %v964 = vadd.f32 %v963, %v949
    %v965 = vadd.f32 %v964, %v950
    %v966 = vrot.slane %v965, 4
    %v967 = vadd.f32 %v965, %v966
    %v968 = vrot.slane %v967, 2
    %v969 = vadd.f32 %v967, %v968
    %v970 = vrot.slane %v969, 1
    %v971 = vadd.f32 %v969, %v970
    %v972 = vcvt.f32.s32.to.zero.pseudo %v971
    %973 = vst [vmem:[#allocation4] sm:$0x1] %v972
    // Predicated region
    $region18: #{tpu_custom_call.1} parent=1 // pred_check
      _
    $region19: #{tpu_custom_call.1} parent=1 // pred_check_branch
      %975 = sbr.rel (0) target = $region21
    $region20: #{tpu_custom_call.1} parent=1 // pred_region
      _
    $region21: #{tpu_custom_call.1} parent=1 // pred_fallthru
      _
    // Predicated region
    $region22: #{tpu_custom_call.1} parent=1 // pred_check
      _
    $region23: #{tpu_custom_call.1} parent=1 // pred_check_branch
      %977 = sbr.rel (0) target = $region25
    $region24: #{tpu_custom_call.1} parent=1 // pred_region
      %s979 = ssub.s32 16, 16
      %980 = vsyncadd [#allocation3], %s979
      %s982 = sshll.u32 [#allocation2], 4
      %s983 = int_to_ptr.vmem [resolvable:$true] %s982
      %985 = dma.vmem_to_hbm [thread:$0]  %s983, 16, %s5, [#allocation3]
    $region25: #{tpu_custom_call.1} parent=1 // pred_fallthru
      _
    // Predicated region
    $region26: #{tpu_custom_call.1} parent=1 // pred_check
      _
    $region27: #{tpu_custom_call.1} parent=1 // pred_check_branch
      %987 = sbr.rel (0) target = $region29
    $region28: #{tpu_custom_call.1} parent=1 // pred_region
      %s989 = ssub.s32 16, 16
      %990 = vsyncadd [#allocation5], %s989
      %s992 = sshll.u32 [#allocation4], 4
      %s993 = int_to_ptr.vmem [resolvable:$true] %s992
      %995 = dma.vmem_to_hbm [thread:$0]  %s993, 16, %s6, [#allocation5]
    $region29: #{tpu_custom_call.1} parent=1 // pred_fallthru
      _
    // Predicated region
    $region30: #{tpu_custom_call.1} parent=1 // pred_check
      _
    $region31: #{tpu_custom_call.1} parent=1 // pred_check_branch
      %997 = sbr.rel (0) target = $region33
    $region32: #{tpu_custom_call.1} parent=1 // pred_region
      _
    $region33: #{tpu_custom_call.1} parent=1 // pred_fallthru
      _
    // Predicated region
    $region34: #{tpu_custom_call.1} parent=1 // pred_check
      _
    $region35: #{tpu_custom_call.1} parent=1 // pred_check_branch
      %999 = sbr.rel (0) target = $region37
    $region36: #{tpu_custom_call.1} parent=1 // pred_region
      %1000 = dma.done [#allocation3], 16
    $region37: #{tpu_custom_call.1} parent=1 // pred_fallthru
      _
    // Predicated region
    $region38: #{tpu_custom_call.1} parent=1 // pred_check
      _
    $region39: #{tpu_custom_call.1} parent=1 // pred_check_branch
      %1002 = sbr.rel (0) target = $region41
    $region40: #{tpu_custom_call.1} parent=1 // pred_region
      %1003 = dma.done [#allocation5], 16
    $region41: #{tpu_custom_call.1} parent=1 // pred_fallthru
      _
    %1004 = vsyncpa [#allocation3], 1
    %1005 = vsyncpa [#allocation5], 1

</llo_original>
